<compile_context>
chip_gen: v6e
topology: v6e:2x2x1
jax: 0.10.0
libtpu: 0.0.40
codegen_flags: <defaults>
</compile_context>

<pallas_src>
import jax
import jax.numpy as jnp
from jax.experimental import pallas as pl
from jax.experimental.pallas import tpu as pltpu

LANE = 128   # padded feature width (lane axis)
HOFF = 8     # lane offset where the l3 (critic-branch) columns live inside the fused head


def actor_critic_kernel(x_ref, w_ref, a_ref, out_ref):
    """x_ref (B,4) f32, w_ref (256,128) bf16 weight slab, a_ref (16,128) f32 aux slab."""
    x = x_ref[...]                                              # (B, 4) f32
    a = a_ref[...]                                              # (16, 128) f32 aux slab

    # F.normalize(x, p=2, dim=0): x / max(||col||_2, 1e-12), done as rsqrt * x (EUP).
    inv = jax.lax.rsqrt(jnp.maximum(jnp.sum(x * x, axis=0, keepdims=True), 1e-24))
    xn = x * inv

    # l1 + relu: tiny (B,4)@(4,128) kept in f32 (weight = aux rows 0..3, bias = row 4).
    y = jnp.dot(xn, a[0:4, :], preferred_element_type=jnp.float32) + a[4:5, :]
    y = jnp.maximum(y, 0.0)                                     # valid lanes [0, 25)

    # l2 + relu: bf16 weights (slab rows [0,128)), f32 accumulate, bias = aux row 5.
    y = jnp.dot(y.astype(jnp.bfloat16), w_ref[0:LANE, :],
                preferred_element_type=jnp.float32) + a[5:6, :]
    y = jnp.maximum(y, 0.0)                                     # valid lanes [0, 50)

    # Fused heads (slab rows [128,256)): actor_lin1 -> lanes [0,2), l3 -> lanes [HOFF,HOFF+25).
    h = jnp.dot(y.astype(jnp.bfloat16), w_ref[LANE:2 * LANE, :],
                preferred_element_type=jnp.float32) + a[6:7, :]

    # Actor head: log_softmax over dim=0 (batch axis); per-lane independent, so computing
    # it on all lanes and keeping lanes 0-1 is exact.
    h_max = jnp.max(h, axis=0, keepdims=True)
    h_shift = h - h_max
    lse = jnp.log(jnp.sum(jnp.exp(h_shift), axis=0, keepdims=True))
    actor_ls = h_shift - lse

    # Critic branch: relu, then VPU multiply with the critic weight row (aux row 7,
    # zero outside the l3 lanes so actor lanes cannot leak) + XLU lane reduce + bias + tanh.
    c = jnp.maximum(h, 0.0)
    cr = jnp.sum(c * a[7:8, :], axis=-1, keepdims=True)         # (B, 1)
    critic = jnp.tanh(cr + a[8:9, 0:1])                         # (B, 1)

    # Combined lane-dense output: actor log-softmax in lanes 0-1, critic elsewhere
    # (only lane 2 is consumed by the wrapper).
    lane = jax.lax.broadcasted_iota(jnp.int32, (1, LANE), 1)
    out_ref[...] = jnp.where(lane < 2, actor_ls, critic)


def prepare_packed_params(params):
    """One-time packing of the PyTorch-layout (out,in) weights into two VMEM slabs."""
    # bf16 MXU slab: rows [0,128) = l2 weight (in x out), rows [128,256) = fused head.
    w = jnp.zeros((2 * LANE, LANE), jnp.float32)
    w = w.at[0:25, 0:50].set(params["w2"].T)                         # l2
    w = w.at[LANE:LANE + 50, 0:2].set(params["wa"].T)                # actor_lin1
    w = w.at[LANE:LANE + 50, HOFF:HOFF + 25].set(params["w3"].T)     # l3
    w = w.astype(jnp.bfloat16)

    # f32 aux slab (16,128): rows 0-3 = l1 weight (in x out), 4 = b1, 5 = b2,
    # 6 = fused head bias, 7 = critic weight row, 8 = critic bias (lane 0).
    a = jnp.zeros((16, LANE), jnp.float32)
    a = a.at[0:4, 0:25].set(params["w1"].T)
    a = a.at[4, 0:25].set(params["b1"])
    a = a.at[5, 0:50].set(params["b2"])
    a = a.at[6, 0:2].set(params["ba"])
    a = a.at[6, HOFF:HOFF + 25].set(params["b3"])
    a = a.at[7, HOFF:HOFF + 25].set(params["wc"][0])
    a = a.at[8, 0].set(params["bc"][0])
    return (w, a)


@jax.jit
def actor_critic_forward(packed_params, x):
    """x: (B, 4) float32 -> (actor (B, 2), critic (B, 1))."""
    w, a = packed_params
    B = x.shape[0]
    vmem = pl.BlockSpec(memory_space=pltpu.MemorySpace.VMEM)
    out = pl.pallas_call(
        actor_critic_kernel,
        out_shape=jax.ShapeDtypeStruct((B, LANE), jnp.float32),
        in_specs=[vmem, vmem, vmem],
        out_specs=vmem,
    )(x, w, a)
    return out[:, :2], out[:, 2:3]


def reference_forward(params, x):
    """Plain-JAX (f32) mirror of the PyTorch forward, for validation."""
    norm = jnp.sqrt(jnp.sum(x * x, axis=0, keepdims=True))
    xn = x / jnp.maximum(norm, 1e-12)
    y = jax.nn.relu(xn @ params["w1"].T + params["b1"])
    y = jax.nn.relu(y @ params["w2"].T + params["b2"])
    actor = jax.nn.log_softmax(y @ params["wa"].T + params["ba"], axis=0)
    c = jax.nn.relu(y @ params["w3"].T + params["b3"])
    critic = jnp.tanh(c @ params["wc"].T + params["bc"])
    return actor, critic


def init_linear(key, fan_in, fan_out):
    """Deterministic PyTorch-style uniform(-1/sqrt(fan_in), 1/sqrt(fan_in)) init."""
    kw, kb = jax.random.split(key)
    bound = 1.0 / jnp.sqrt(jnp.float32(fan_in))
    w = jax.random.uniform(kw, (fan_out, fan_in), jnp.float32, -bound, bound)
    b = jax.random.uniform(kb, (fan_out,), jnp.float32, -bound, bound)
    return w, b


if __name__ == "__main__":
    key = jax.random.PRNGKey(0)
    k_x, k1, k2, ka, k3, kc = jax.random.split(key, 6)

    params = {}
    params["w1"], params["b1"] = init_linear(k1, 4, 25)    # l1
    params["w2"], params["b2"] = init_linear(k2, 25, 50)   # l2
    params["wa"], params["ba"] = init_linear(ka, 50, 2)    # actor_lin1
    params["w3"], params["b3"] = init_linear(k3, 50, 25)   # l3
    params["wc"], params["bc"] = init_linear(kc, 25, 1)    # critic_lin1

    # Pack / pad / transpose the weights ONCE (outside the per-call path).
    packed_params = jax.block_until_ready(prepare_packed_params(params))

    B = 8
    x = jax.random.normal(k_x, (B, 4), jnp.float32)

    actor, critic = actor_critic_forward(packed_params, x)
    jax.block_until_ready((actor, critic))

    actor_ref, critic_ref = reference_forward(params, x)
    assert actor.shape == (B, 2) and critic.shape == (B, 1)
    # Tolerances account for the bf16 weights on the two wide matmuls (f32 accumulation).
    assert jnp.allclose(actor, actor_ref, rtol=2e-2, atol=2e-2)
    assert jnp.allclose(critic, critic_ref, rtol=2e-2, atol=2e-2)

    print("KERNEL_OK")
</pallas_src>

<mosaic_0001>
module attributes {stable_mosaic.version = 11 : i64} {
  func.func @actor_critic_kernel(%arg0: memref<8x4xf32, #tpu.memory_space<vmem>>, %arg1: memref<256x128xbf16, #tpu.memory_space<vmem>>, %arg2: memref<16x128xf32, #tpu.memory_space<vmem>>, %arg3: memref<8x128xf32, #tpu.memory_space<vmem>>) attributes {dimension_semantics = [], scalar_prefetch = 0 : i64, scratch_operands = 0 : i64, tpu.core_type = #tpu.core_type<tc>} {
    %c0 = arith.constant 0 : index
    %c0_0 = arith.constant 0 : index
    %0 = vector.load %arg0[%c0, %c0_0] : memref<8x4xf32, #tpu.memory_space<vmem>>, vector<8x4xf32>
    %c0_1 = arith.constant 0 : index
    %c0_2 = arith.constant 0 : index
    %1 = vector.load %arg2[%c0_1, %c0_2] : memref<16x128xf32, #tpu.memory_space<vmem>>, vector<16x128xf32>
    %2 = arith.mulf %0, %0 : vector<8x4xf32>
    %cst = arith.constant dense<0.000000e+00> : vector<4xf32>
    %3 = vector.multi_reduction <add>, %2, %cst [0] : vector<8x4xf32> to vector<4xf32>
    %4 = vector.shape_cast %3 : vector<4xf32> to vector<1x4xf32>
    %cst_3 = arith.constant 1.000000e-24 : f32
    %5 = vector.broadcast %cst_3 : f32 to vector<1x4xf32>
    %6 = arith.maximumf %4, %5 : vector<1x4xf32>
    %7 = math.rsqrt %6 : vector<1x4xf32>
    %8 = vector.broadcast %7 : vector<1x4xf32> to vector<8x4xf32>
    %9 = arith.mulf %0, %8 : vector<8x4xf32>
    %10 = vector.extract_strided_slice %1 {offsets = [0, 0], sizes = [4, 128], strides = [1, 1]} : vector<16x128xf32> to vector<4x128xf32>
    %cst_4 = arith.constant dense<0.000000e+00> : vector<8x128xf32>
    %11 = tpu.matmul %9, %10, %cst_4 {dimension_numbers = #tpu.dot_dimension_numbers<[1], [0], [0], [1], [0, 0, 1, 1], [], []>} : vector<8x4xf32>, vector<4x128xf32>, vector<8x128xf32> -> vector<8x128xf32>
    %12 = vector.extract_strided_slice %1 {offsets = [4, 0], sizes = [1, 128], strides = [1, 1]} : vector<16x128xf32> to vector<1x128xf32>
    %13 = vector.broadcast %12 : vector<1x128xf32> to vector<8x128xf32>
    %14 = arith.addf %11, %13 : vector<8x128xf32>
    %cst_5 = arith.constant 0.000000e+00 : f32
    %15 = vector.broadcast %cst_5 : f32 to vector<8x128xf32>
    %16 = arith.maximumf %14, %15 : vector<8x128xf32>
    %17 = arith.truncf %16 : vector<8x128xf32> to vector<8x128xbf16>
    %c0_6 = arith.constant 0 : index
    %c0_7 = arith.constant 0 : index
    %18 = vector.load %arg1[%c0_6, %c0_7] : memref<256x128xbf16, #tpu.memory_space<vmem>>, vector<128x128xbf16>
    %cst_8 = arith.constant dense<0.000000e+00> : vector<8x128xf32>
    %19 = tpu.matmul %17, %18, %cst_8 {dimension_numbers = #tpu.dot_dimension_numbers<[1], [0], [0], [1], [0, 0, 1, 1], [], []>} : vector<8x128xbf16>, vector<128x128xbf16>, vector<8x128xf32> -> vector<8x128xf32>
    %20 = vector.extract_strided_slice %1 {offsets = [5, 0], sizes = [1, 128], strides = [1, 1]} : vector<16x128xf32> to vector<1x128xf32>
    %21 = vector.broadcast %20 : vector<1x128xf32> to vector<8x128xf32>
    %22 = arith.addf %19, %21 : vector<8x128xf32>
    %cst_9 = arith.constant 0.000000e+00 : f32
    %23 = vector.broadcast %cst_9 : f32 to vector<8x128xf32>
    %24 = arith.maximumf %22, %23 : vector<8x128xf32>
    %25 = arith.truncf %24 : vector<8x128xf32> to vector<8x128xbf16>
    %c128 = arith.constant 128 : index
    %c0_10 = arith.constant 0 : index
    %26 = vector.load %arg1[%c128, %c0_10] : memref<256x128xbf16, #tpu.memory_space<vmem>>, vector<128x128xbf16>
    %cst_11 = arith.constant dense<0.000000e+00> : vector<8x128xf32>
    %27 = tpu.matmul %25, %26, %cst_11 {dimension_numbers = #tpu.dot_dimension_numbers<[1], [0], [0], [1], [0, 0, 1, 1], [], []>} : vector<8x128xbf16>, vector<128x128xbf16>, vector<8x128xf32> -> vector<8x128xf32>
    %28 = vector.extract_strided_slice %1 {offsets = [6, 0], sizes = [1, 128], strides = [1, 1]} : vector<16x128xf32> to vector<1x128xf32>
    %29 = vector.broadcast %28 : vector<1x128xf32> to vector<8x128xf32>
    %30 = arith.addf %27, %29 : vector<8x128xf32>
    %cst_12 = arith.constant dense<0xFF800000> : vector<128xf32>
    %31 = vector.multi_reduction <maximumf>, %30, %cst_12 [0] : vector<8x128xf32> to vector<128xf32>
    %32 = vector.shape_cast %31 : vector<128xf32> to vector<1x128xf32>
    %33 = vector.broadcast %32 : vector<1x128xf32> to vector<8x128xf32>
    %34 = arith.subf %30, %33 : vector<8x128xf32>
    %35 = math.exp %34 : vector<8x128xf32>
    %cst_13 = arith.constant dense<0.000000e+00> : vector<128xf32>
    %36 = vector.multi_reduction <add>, %35, %cst_13 [0] : vector<8x128xf32> to vector<128xf32>
    %37 = vector.shape_cast %36 : vector<128xf32> to vector<1x128xf32>
    %38 = math.log %37 : vector<1x128xf32>
    %39 = vector.broadcast %38 : vector<1x128xf32> to vector<8x128xf32>
    %40 = arith.subf %34, %39 : vector<8x128xf32>
    %cst_14 = arith.constant 0.000000e+00 : f32
    %41 = vector.broadcast %cst_14 : f32 to vector<8x128xf32>
    %42 = arith.maximumf %30, %41 : vector<8x128xf32>
    %43 = vector.extract_strided_slice %1 {offsets = [7, 0], sizes = [1, 128], strides = [1, 1]} : vector<16x128xf32> to vector<1x128xf32>
    %44 = vector.broadcast %43 : vector<1x128xf32> to vector<8x128xf32>
    %45 = arith.mulf %42, %44 : vector<8x128xf32>
    %cst_15 = arith.constant dense<0.000000e+00> : vector<8xf32>
    %46 = vector.multi_reduction <add>, %45, %cst_15 [1] : vector<8x128xf32> to vector<8xf32>
    %47 = vector.shape_cast %46 : vector<8xf32> to vector<8x1xf32>
    %48 = vector.extract_strided_slice %1 {offsets = [8, 0], sizes = [1, 1], strides = [1, 1]} : vector<16x128xf32> to vector<1x1xf32>
    %49 = vector.broadcast %48 : vector<1x1xf32> to vector<8x1xf32>
    %50 = arith.addf %47, %49 : vector<8x1xf32>
    %51 = math.tanh %50 : vector<8x1xf32>
    %52 = tpu.iota {dimensions = array<i32: 1>} : vector<1x128xi32>
    %c2_i32 = arith.constant 2 : i32
    %53 = vector.broadcast %c2_i32 : i32 to vector<1x128xi32>
    %54 = arith.cmpi slt, %52, %53 : vector<1x128xi32>
    %55 = vector.shape_cast %54 : vector<1x128xi1> to vector<1x128xi1>
    %56 = vector.broadcast %55 : vector<1x128xi1> to vector<8x128xi1>
    %57 = vector.shape_cast %51 : vector<8x1xf32> to vector<8x1xf32>
    %58 = vector.broadcast %57 : vector<8x1xf32> to vector<8x128xf32>
    %59 = arith.select %56, %40, %58 : vector<8x128xi1>, vector<8x128xf32>
    %c0_16 = arith.constant 0 : index
    %c0_17 = arith.constant 0 : index
    %60 = vector.load %arg3[%c0_16, %c0_17] : memref<8x128xf32, #tpu.memory_space<vmem>>, vector<8x128xf32>
    tpu.vector_store %arg3[%c0_16, %c0_17], %59 {strides = array<i32>} : memref<8x128xf32, #tpu.memory_space<vmem>>, vector<8x128xf32>,
    return
  }
}

</mosaic_0001>

<llo_original>
// kernel: actor_critic_forward.1
$region0: #{actor_critic_forward.1}
  #allocation0 [shape = 'u32[]', space=smem, size = 0x4, offset = 0x4, fixed_abs, tag = 'smem constant byte address 0x4 - core index']
  #allocation1 [shape = 'u32[144,128]{1,0:T(1,128)}', space=vmem, size = 0x12000, scoped, tag = 'internal scratch']
  %s0 = inlined_call_operand.vmem [shape: f32[8,4], index: 0, kind: input, shape index: {}]
  %s1 = inlined_call_operand.hbm [shape: bf16[256,128], index: 1, kind: input, shape index: {}]
  %s2 = inlined_call_operand.hbm [shape: f32[16,128], index: 2, kind: input, shape index: {}]
  %s3 = inlined_call_operand.vmem [shape: f32[8,128], index: 3, kind: output, shape index: {}]
  %s4 = sld [smem:[#allocation0]]
  $region30: #{actor_critic_forward.1} parent=0
    _
  %s6 = ssub.s32 1, %s4
  %s7 = scalar_select 0, %s6, %s4
  $region1: #{actor_critic_forward.1} parent=0
    #allocation2 [shape = 'u8[65536]{0}', space=vmem, size = 0x10000, scoped, tag = 'input window, operand 1, single buffered']
    #allocation3 [shape = 's32[1]{0}', space=sflag, size = 0x4, scoped, tag = 'scoped memory for actor_critic_forward.1']
    #allocation4 [shape = 'u8[8192]{0}', space=vmem, size = 0x2000, scoped, tag = 'input window, operand 2, single buffered']
    #allocation5 [shape = 's32[1]{0}', space=sflag, size = 0x4, scoped, tag = 'scoped memory for actor_critic_forward.1']
    %8 = vsyncpa [#allocation3], 0
    %9 = vsyncpa [#allocation5], 0
    // Predicated region
    $region2: #{actor_critic_forward.1} parent=1 // pred_check
      _
    $region3: #{actor_critic_forward.1} parent=1 // pred_check_branch
      %11 = sbr.rel (0) target = $region5
    $region4: #{actor_critic_forward.1} parent=1 // pred_region
      _
    $region5: #{actor_critic_forward.1} parent=1 // pred_fallthru
      _
    // Predicated region
    $region6: #{actor_critic_forward.1} parent=1 // pred_check
      _
    $region7: #{actor_critic_forward.1} parent=1 // pred_check_branch
      %13 = sbr.rel (0) target = $region9
    $region8: #{actor_critic_forward.1} parent=1 // pred_region
      %s15 = ssub.s32 2048, 2048
      %16 = vsyncadd [#allocation3], %s15
      %s17 = sshll.u32 [#allocation2], 4
      %s18 = int_to_ptr.vmem [resolvable:$true] %s17
      %23 = dma.hbm_to_vmem [thread:$0]  %s1, 2048, %s18, [#allocation3], 64, 64, 4
    $region9: #{actor_critic_forward.1} parent=1 // pred_fallthru
      _
    // Predicated region
    $region10: #{actor_critic_forward.1} parent=1 // pred_check
      _
    $region11: #{actor_critic_forward.1} parent=1 // pred_check_branch
      %25 = sbr.rel (0) target = $region13
    $region12: #{actor_critic_forward.1} parent=1 // pred_region
      %s27 = ssub.s32 256, 256
      %28 = vsyncadd [#allocation5], %s27
      %s29 = sshll.u32 [#allocation4], 4
      %s30 = int_to_ptr.vmem [resolvable:$true] %s29
      %35 = dma.hbm_to_vmem [thread:$0]  %s2, 256, %s30, [#allocation5], 128, 128, 8
    $region13: #{actor_critic_forward.1} parent=1 // pred_fallthru
      _
    // Predicated region
    $region14: #{actor_critic_forward.1} parent=1 // pred_check
      _
    $region15: #{actor_critic_forward.1} parent=1 // pred_check_branch
      %37 = sbr.rel (0) target = $region17
    $region16: #{actor_critic_forward.1} parent=1 // pred_region
      %38 = dma.done [#allocation3], 2048
    $region17: #{actor_critic_forward.1} parent=1 // pred_fallthru
      _
    // Predicated region
    $region18: #{actor_critic_forward.1} parent=1 // pred_check
      _
    $region19: #{actor_critic_forward.1} parent=1 // pred_check_branch
      %40 = sbr.rel (0) target = $region21
    $region20: #{actor_critic_forward.1} parent=1 // pred_region
      %41 = dma.done [#allocation5], 256
    $region21: #{actor_critic_forward.1} parent=1 // pred_fallthru
      _
    %v43 = vld [vmem:[%s0] sm:$0xff]
    %v44 = vld [vmem:[#allocation4] sm:$0xff]
    %v45 = vld [vmem:[#allocation4 + $0x8] sm:$0xff]
    %v46 = vmul.f32 %v43, %v43
    %vm47 = vcmask 31744
    %v48 = vsel %vm47, %v46, 0.0
    %v49 = vrot.slane %v48, 4
    %v50 = vadd.f32 %v48, %v49
    %v51 = vrot.slane %v50, 2
    %v52 = vadd.f32 %v50, %v51
    %v53 = vrot.slane %v52, 1
    %v54 = vadd.f32 %v52, %v53
    %v55 = vmax.f32 %v54, 1e-24
    %v56 = vrsqrt.pop %v55
    %v57 = vmul.f32 %v43, %v56
    %v58 = vlaneseq
    %v59 = vshrl.u32 %v58, 7
    %v60 = vsub.s32 4, %v59
    %v61 = vrot.slane %v44, %v60
    %v63 = vsel %vm47, %v57, 0
    %vm65 = vcmask 1043456
    %v67 = vsel %vm65, %v44, 0
    %69 = vmatprep.subr.mxu0 0.0
    %70 = vmatpush1.msra.mxu0 0.0
    %71 = vmatprep.subr.mxu0 0.0
    %72 = vmatpush1.msra.mxu0 0.0
    %73 = vmatprep.subr.mxu0 0.0
    %74 = vmatpush1.msra.mxu0 0.0
    %75 = vmatprep.subr.mxu0 0.0
    %76 = vmatpush1.msra.mxu0 0.0
    %77 = vmatprep.subr.mxu0 0.0
    %78 = vmatpush1.msra.mxu0 0.0
    %79 = vmatprep.subr.mxu0 0.0
    %80 = vmatpush1.msra.mxu0 0.0
    %81 = vmatprep.subr.mxu0 0.0
    %82 = vmatpush1.msra.mxu0 0.0
    %83 = vmatprep.subr.mxu0 0.0
    %84 = vmatpush1.msra.mxu0 0.0
    %85 = vmatprep.subr.mxu0 0.0
    %86 = vmatpush1.msra.mxu0 0.0
    %87 = vmatprep.subr.mxu0 0.0
    %88 = vmatpush1.msra.mxu0 0.0
    %89 = vmatprep.subr.mxu0 0.0
    %90 = vmatpush1.msra.mxu0 0.0
    %91 = vmatprep.subr.mxu0 0.0
    %92 = vmatpush1.msra.mxu0 0.0
    %93 = vmatprep.subr.mxu0 0.0
    %94 = vmatpush1.msra.mxu0 0.0
    %95 = vmatprep.subr.mxu0 0.0
    %96 = vmatpush1.msra.mxu0 0.0
    %97 = vmatprep.subr.mxu0 0.0
    %98 = vmatpush1.msra.mxu0 0.0
    %99 = vmatprep.subr.mxu0 0.0
    %100 = vmatpush1.msra.mxu0 %v67
    %101 = vmatprep.subr.mxu0 0.0
    %102 = vmatpush2.msra.mxu0 0.0
    %103 = vmatprep.subr.mxu0 0.0
    %104 = vmatpush2.msra.mxu0 0.0
    %105 = vmatprep.subr.mxu0 0.0
    %106 = vmatpush2.msra.mxu0 0.0
    %107 = vmatprep.subr.mxu0 0.0
    %108 = vmatpush2.msra.mxu0 0.0
    %109 = vmatprep.subr.mxu0 0.0
    %110 = vmatpush2.msra.mxu0 0.0
    %111 = vmatprep.subr.mxu0 0.0
    %112 = vmatpush2.msra.mxu0 0.0
    %113 = vmatprep.subr.mxu0 0.0
    %114 = vmatpush2.msra.mxu0 0.0
    %115 = vmatprep.subr.mxu0 0.0
    %116 = vmatpush2.msra.mxu0 0.0
    %117 = vmatprep.subr.mxu0 0.0
    %118 = vmatpush2.msra.mxu0 0.0
    %119 = vmatprep.subr.mxu0 0.0
    %120 = vmatpush2.msra.mxu0 0.0
    %121 = vmatprep.subr.mxu0 0.0
    %122 = vmatpush2.msra.mxu0 0.0
    %123 = vmatprep.subr.mxu0 0.0
    %124 = vmatpush2.msra.mxu0 0.0
    %125 = vmatprep.subr.mxu0 0.0
    %126 = vmatpush2.msra.mxu0 0.0
    %127 = vmatprep.subr.mxu0 0.0
    %128 = vmatpush2.msra.mxu0 0.0
    %129 = vmatprep.subr.mxu0 0.0
    %130 = vmatpush2.msra.mxu0 0.0
    %131 = vmatprep.subr.mxu0 0.0
    %132 = vmatpush2.msra.mxu0 0.0
    %133 = vmatprep.mubr.f32.mxu0 0.0
    %134 = vmatmul.mubr.f32.gmra.mxu0 %v63
    %v135 = vpop.f32.mrf.mxu0
    %v136 = vadd.f32 %v61, %v135
    %v137 = vpop.f32.mrf.mxu0
    %138 = vdwg.mxu0
    %v139 = vmax.f32 %v136, 0.0
    %v140 = vpack.c.bf16 %v139, %v139
    %v141 = vld [vmem:[#allocation2] sm:$0xf]
    %v142 = vld [vmem:[#allocation2 + $0x4] sm:$0xf]
    %v143 = vld [vmem:[#allocation2 + $0x8] sm:$0xf]
    %v144 = vld [vmem:[#allocation2 + $0xc] sm:$0xf]
    %v145 = vld [vmem:[#allocation2 + $0x10] sm:$0xf]
    %v146 = vld [vmem:[#allocation2 + $0x14] sm:$0xf]
    %v147 = vld [vmem:[#allocation2 + $0x18] sm:$0xf]
    %v148 = vld [vmem:[#allocation2 + $0x1c] sm:$0xf]
    %v149 = vld [vmem:[#allocation2 + $0x20] sm:$0xf]
    %v150 = vld [vmem:[#allocation2 + $0x24] sm:$0xf]
    %v151 = vld [vmem:[#allocation2 + $0x28] sm:$0xf]
    %v152 = vld [vmem:[#allocation2 + $0x2c] sm:$0xf]
    %v153 = vld [vmem:[#allocation2 + $0x30] sm:$0xf]
    %v154 = vld [vmem:[#allocation2 + $0x34] sm:$0xf]
    %v155 = vld [vmem:[#allocation2 + $0x38] sm:$0xf]
    %v156 = vld [vmem:[#allocation2 + $0x3c] sm:$0xf]
    %v157 = vlaneseq
    %v158 = vshrl.u32 %v157, 7
    %v159 = vsub.s32 5, %v158
    %v160 = vrot.slane %v44, %v159
    %v177 = vunpack.c.l.b16 %v141
    %v178 = vunpack.c.l.b16 %v142
    %v179 = vunpack.c.l.b16 %v143
    %v180 = vunpack.c.l.b16 %v144
    %v181 = vunpack.c.l.b16 %v145
    %v182 = vunpack.c.l.b16 %v146
    %v183 = vunpack.c.l.b16 %v147
    %v184 = vunpack.c.l.b16 %v148
    %v185 = vunpack.c.l.b16 %v149
    %v186 = vunpack.c.l.b16 %v150
    %v187 = vunpack.c.l.b16 %v151
    %v188 = vunpack.c.l.b16 %v152
    %v189 = vunpack.c.l.b16 %v153
    %v190 = vunpack.c.l.b16 %v154
    %v191 = vunpack.c.l.b16 %v155
    %v192 = vunpack.c.l.b16 %v156
    %v193 = vpack.c.b16 %v178, %v177
    %v194 = vpack.c.b16 %v180, %v179
    %v195 = vpack.c.b16 %v182, %v181
    %v196 = vpack.c.b16 %v184, %v183
    %v197 = vpack.c.b16 %v186, %v185
    %v198 = vpack.c.b16 %v188, %v187
    %v199 = vpack.c.b16 %v190, %v189
    %v200 = vpack.c.b16 %v192, %v191
    %209 = vmatprep.subr.bf16.mxu0 0
    %210 = vmatpush1.bf16.msra.mxu0 %v200
    %211 = vmatprep.subr.bf16.mxu0 0
    %212 = vmatpush1.bf16.msra.mxu0 %v199
    %213 = vmatprep.subr.bf16.mxu0 0
    %214 = vmatpush1.bf16.msra.mxu0 %v198
    %215 = vmatprep.subr.bf16.mxu0 0
    %216 = vmatpush1.bf16.msra.mxu0 %v197
    %217 = vmatprep.subr.bf16.mxu0 0
    %218 = vmatpush1.bf16.msra.mxu0 %v196
    %219 = vmatprep.subr.bf16.mxu0 0
    %220 = vmatpush1.bf16.msra.mxu0 %v195
    %221 = vmatprep.subr.bf16.mxu0 0
    %222 = vmatpush1.bf16.msra.mxu0 %v194
    %223 = vmatprep.subr.bf16.mxu0 0
    %224 = vmatpush1.bf16.msra.mxu0 %v193
    %225 = vmatprep.subr.bf16.mxu0 0
    %226 = vmatpush2.bf16.msra.mxu0 0
    %227 = vmatprep.subr.bf16.mxu0 0
    %228 = vmatpush2.bf16.msra.mxu0 0
    %229 = vmatprep.subr.bf16.mxu0 0
    %230 = vmatpush2.bf16.msra.mxu0 0
    %231 = vmatprep.subr.bf16.mxu0 0
    %232 = vmatpush2.bf16.msra.mxu0 0
    %233 = vmatprep.subr.bf16.mxu0 0
    %234 = vmatpush2.bf16.msra.mxu0 0
    %235 = vmatprep.subr.bf16.mxu0 0
    %236 = vmatpush2.bf16.msra.mxu0 0
    %237 = vmatprep.subr.bf16.mxu0 0
    %238 = vmatpush2.bf16.msra.mxu0 0
    %239 = vmatprep.subr.bf16.mxu0 0
    %240 = vmatpush2.bf16.msra.mxu0 0
    %241 = vmatprep.mubr.bf16.mxu0 0
    %242 = vmatmul.mubr.bf16.gmra.mxu0 %v140
    %v243 = vpop.f32.mrf.mxu0
    %v244 = vadd.f32 %v160, %v243
    %v245 = vpop.f32.mrf.mxu0
    %v246 = vpop.f32.mrf.mxu0
    %v247 = vpop.f32.mrf.mxu0
    %248 = vdwg.mxu0
    %v249 = vmax.f32 %v244, 0.0
    %v250 = vpack.c.bf16 %v249, %v249
    %v251 = vld [vmem:[#allocation2 + $0x40] sm:$0xf]
    %v252 = vld [vmem:[#allocation2 + $0x44] sm:$0xf]
    %v253 = vld [vmem:[#allocation2 + $0x48] sm:$0xf]
    %v254 = vld [vmem:[#allocation2 + $0x4c] sm:$0xf]
    %v255 = vld [vmem:[#allocation2 + $0x50] sm:$0xf]
    %v256 = vld [vmem:[#allocation2 + $0x54] sm:$0xf]
    %v257 = vld [vmem:[#allocation2 + $0x58] sm:$0xf]
    %v258 = vld [vmem:[#allocation2 + $0x5c] sm:$0xf]
    %v259 = vld [vmem:[#allocation2 + $0x60] sm:$0xf]
    %v260 = vld [vmem:[#allocation2 + $0x64] sm:$0xf]
    %v261 = vld [vmem:[#allocation2 + $0x68] sm:$0xf]
    %v262 = vld [vmem:[#allocation2 + $0x6c] sm:$0xf]
    %v263 = vld [vmem:[#allocation2 + $0x70] sm:$0xf]
    %v264 = vld [vmem:[#allocation2 + $0x74] sm:$0xf]
    %v265 = vld [vmem:[#allocation2 + $0x78] sm:$0xf]
    %v266 = vld [vmem:[#allocation2 + $0x7c] sm:$0xf]
    %v267 = vlaneseq
    %v268 = vshrl.u32 %v267, 7
    %v269 = vsub.s32 6, %v268
    %v270 = vrot.slane %v44, %v269
    %v287 = vunpack.c.l.b16 %v251
    %v288 = vunpack.c.l.b16 %v252
    %v289 = vunpack.c.l.b16 %v253
    %v290 = vunpack.c.l.b16 %v254
    %v291 = vunpack.c.l.b16 %v255
    %v292 = vunpack.c.l.b16 %v256
    %v293 = vunpack.c.l.b16 %v257
    %v294 = vunpack.c.l.b16 %v258
    %v295 = vunpack.c.l.b16 %v259
    %v296 = vunpack.c.l.b16 %v260
    %v297 = vunpack.c.l.b16 %v261
    %v298 = vunpack.c.l.b16 %v262
    %v299 = vunpack.c.l.b16 %v263
    %v300 = vunpack.c.l.b16 %v264
    %v301 = vunpack.c.l.b16 %v265
    %v302 = vunpack.c.l.b16 %v266
    %v303 = vpack.c.b16 %v288, %v287
    %v304 = vpack.c.b16 %v290, %v289
    %v305 = vpack.c.b16 %v292, %v291
    %v306 = vpack.c.b16 %v294, %v293
    %v307 = vpack.c.b16 %v296, %v295
    %v308 = vpack.c.b16 %v298, %v297
    %v309 = vpack.c.b16 %v300, %v299
    %v310 = vpack.c.b16 %v302, %v301
    %319 = vmatprep.subr.bf16.mxu0 0
    %320 = vmatpush1.bf16.msra.mxu0 %v310
    %321 = vmatprep.subr.bf16.mxu0 0
    %322 = vmatpush1.bf16.msra.mxu0 %v309
    %323 = vmatprep.subr.bf16.mxu0 0
    %324 = vmatpush1.bf16.msra.mxu0 %v308
    %325 = vmatprep.subr.bf16.mxu0 0
    %326 = vmatpush1.bf16.msra.mxu0 %v307
    %327 = vmatprep.subr.bf16.mxu0 0
    %328 = vmatpush1.bf16.msra.mxu0 %v306
    %329 = vmatprep.subr.bf16.mxu0 0
    %330 = vmatpush1.bf16.msra.mxu0 %v305
    %331 = vmatprep.subr.bf16.mxu0 0
    %332 = vmatpush1.bf16.msra.mxu0 %v304
    %333 = vmatprep.subr.bf16.mxu0 0
    %334 = vmatpush1.bf16.msra.mxu0 %v303
    %335 = vmatprep.subr.bf16.mxu0 0
    %336 = vmatpush2.bf16.msra.mxu0 0
    %337 = vmatprep.subr.bf16.mxu0 0
    %338 = vmatpush2.bf16.msra.mxu0 0
    %339 = vmatprep.subr.bf16.mxu0 0
    %340 = vmatpush2.bf16.msra.mxu0 0
    %341 = vmatprep.subr.bf16.mxu0 0
    %342 = vmatpush2.bf16.msra.mxu0 0
    %343 = vmatprep.subr.bf16.mxu0 0
    %344 = vmatpush2.bf16.msra.mxu0 0
    %345 = vmatprep.subr.bf16.mxu0 0
    %346 = vmatpush2.bf16.msra.mxu0 0
    %347 = vmatprep.subr.bf16.mxu0 0
    %348 = vmatpush2.bf16.msra.mxu0 0
    %349 = vmatprep.subr.bf16.mxu0 0
    %350 = vmatpush2.bf16.msra.mxu0 0
    %351 = vmatprep.mubr.bf16.mxu0 0
    %352 = vmatmul.mubr.bf16.gmra.mxu0 %v250
    %v353 = vpop.f32.mrf.mxu0
    %v354 = vadd.f32 %v270, %v353
    %v355 = vpop.f32.mrf.mxu0
    %v356 = vpop.f32.mrf.mxu0
    %v357 = vpop.f32.mrf.mxu0
    %358 = vdwg.mxu0
    %v359 = vrot.slane %v354, 4
    %v360 = vmax.f32 %v354, %v359
    %v361 = vrot.slane %v360, 2
    %v362 = vmax.f32 %v360, %v361
    %v363 = vrot.slane %v362, 1
    %v364 = vmax.f32 %v362, %v363
    %v365 = vsub.f32 %v354, %v364
    %v366 = vmul.f32 %v365, 1.442695
    %v367 = vpow.pop %v366
    %v368 = vrot.slane %v367, 4
    %v369 = vadd.f32 %v367, %v368
    %v370 = vrot.slane %v369, 2
    %v371 = vadd.f32 %v369, %v370
    %v372 = vrot.slane %v371, 1
    %v373 = vadd.f32 %v371, %v372
    %v374 = vlog2.pop %v373
    %v375 = vmul.f32 %v374, 0.6931472
    %v376 = vsub.f32 %v365, %v375
    %v377 = vmax.f32 %v354, 0.0
    %v378 = vlaneseq
    %v379 = vshrl.u32 %v378, 7
    %v380 = vsub.s32 7, %v379
    %v381 = vrot.slane %v44, %v380
    %v382 = vmul.f32 %v377, %v381
    %383 = vadd.xlane.f32.xlu0 %v382
    %v384 = vpop.xlane.xlu0 %383
    %v385 = vlaneseq
    %v386 = vshrl.u32 %v385, 7
    %v387 = vsub.s32 0, %v386
    %v388 = vrot.slane %v45, %v387
    %v389 = vadd.f32 %v384, %v388
    %v390 = vtanh.pop %v389
    %v391 = vlaneseq
    %v392 = vand.u32 %v391, 127
    %vm393 = vcmp.lt.s32.totalorder %v392, 2
    %v394 = vsel %vm393, 1, 0
    %vm395 = vcmp.eq.s32.totalorder %v394, 1
    %397 = vset.pattern.permute.xlu0 0
    %398 = vperm.xlu0 %397, %v390
    %v399 = vpop.permute.xlu0 %398
    %v401 = vsel %vm395, %v376, %v399
    %402 = vst [vmem:[%s3] sm:$0xff] %v401
    // Predicated region
    $region22: #{actor_critic_forward.1} parent=1 // pred_check
      _
    $region23: #{actor_critic_forward.1} parent=1 // pred_check_branch
      %404 = sbr.rel (0) target = $region25
    $region24: #{actor_critic_forward.1} parent=1 // pred_region
      _
    $region25: #{actor_critic_forward.1} parent=1 // pred_fallthru
      _
    // Predicated region
    $region26: #{actor_critic_forward.1} parent=1 // pred_check
      _
    $region27: #{actor_critic_forward.1} parent=1 // pred_check_branch
      %406 = sbr.rel (0) target = $region29
    $region28: #{actor_critic_forward.1} parent=1 // pred_region
      _
    $region29: #{actor_critic_forward.1} parent=1 // pred_fallthru
      _
    %407 = vsyncpa [#allocation3], 1
    %408 = vsyncpa [#allocation5], 1

</llo_original>
